<compile_context>
chip_gen: v5e
topology: v5e:2x2
jax: 0.10.0
libtpu: 0.0.40
codegen_flags: <defaults>
</compile_context>

<pallas_src>
import functools

import jax
import jax.numpy as jnp
import numpy as np
from jax.experimental import pallas as pl
from jax.experimental.pallas import tpu as pltpu


# ----------------------------- Pallas kernels -------------------------------

def _pool_excite_kernel(hw, tile_hw, ragged,
                        edge_ref, w1_ref, w2_ref, s_ref, sum_sc, max_sc):
    """Fused global avg/max pooling over H*W + excitation MLP + sigmoid.

    edge_ref: (1, C, TILE_HW) block of edge[n] (native dtype, upcast in-register).
    w1_ref / w2_ref: (C, C) 1x1-conv weights (C_out, C_in), f32, resident.
    s_ref: (1, C, 1) per-(sample, channel) sigmoid scale (written only at finalize).
    sum_sc / max_sc: (1, C, TILE_HW) f32 lane-wide accumulators (pure VPU per step).
    """
    t = pl.program_id(1)
    f32 = jnp.float32

    @pl.when(t == 0)
    def _init():
        sum_sc[...] = jnp.zeros(sum_sc.shape, sum_sc.dtype)
        max_sc[...] = jnp.full(max_sc.shape, -jnp.inf, max_sc.dtype)

    e = edge_ref[...].astype(f32)                               # (1, C, TH)
    if ragged:
        col = jax.lax.broadcasted_iota(jnp.int32, e.shape, 2) + t * tile_hw
        valid = col < hw
        e_sum = jnp.where(valid, e, 0.0)
        e_max = jnp.where(valid, e, -jnp.inf)
    else:
        e_sum = e
        e_max = e

    sum_sc[...] = sum_sc[...] + e_sum                           # VPU add
    max_sc[...] = jnp.maximum(max_sc[...], e_max)               # VPU max

    @pl.when(t == pl.num_programs(1) - 1)
    def _finalize():
        # Single cross-lane reduce per sample (XLU), then the tiny MLP.
        avg_col = jnp.sum(sum_sc[0], axis=-1, keepdims=True) * (1.0 / hw)   # (C, 1)
        max_col = jnp.max(max_sc[0], axis=-1, keepdims=True)                # (C, 1)
        w1 = w1_ref[...]
        w2 = w2_ref[...]
        # fc2 is linear (no bias): fc2(relu(fc1(a))) + fc2(relu(fc1(b)))
        #   == W2 @ (relu(W1 @ a) + relu(W1 @ b))
        h = (jnp.maximum(jnp.dot(w1, avg_col, preferred_element_type=f32), 0.0)
             + jnp.maximum(jnp.dot(w1, max_col, preferred_element_type=f32), 0.0))
        s_col = jax.nn.sigmoid(jnp.dot(w2, h, preferred_element_type=f32))  # (C, 1)
        s_ref[0] = s_col


def _apply_kernel(x_ref, s_ref, out_ref):
    """out = x * s, broadcasting the per-(sample, channel) scale over the lane axis."""
    x = x_ref[...].astype(jnp.float32)                          # (1, C, TH)
    out_ref[...] = (x * s_ref[...]).astype(out_ref.dtype)       # (1,C,TH) * (1,C,1)


# ------------------------------ wrapper --------------------------------------

def _pick_tile_hw(hw, c, itemsize, tile_bytes):
    """Largest spatial tile (multiple of 128 lanes) under a per-block byte cap."""
    cap = max(128, (tile_bytes // (itemsize * c)) // 128 * 128)
    if hw <= cap:
        return hw                     # single full-extent tile (full-dim block is legal)
    return cap                        # ragged tail handled by masking in the kernel


@functools.partial(jax.jit,
                   static_argnames=("tile_hw", "tile_bytes", "vmem_limit_bytes"))
def edge_weight_attention(x, edge, fc1_w, fc2_w, *, tile_hw=None,
                          tile_bytes=4 * 1024 * 1024,
                          vmem_limit_bytes=48 * 1024 * 1024):
    """x, edge: (N, C, H, W); fc1_w, fc2_w: (C, C, 1, 1) 1x1-conv weights (no bias)."""
    N, C, H, W = x.shape
    assert edge.shape == x.shape, "x and edge must have identical shapes"
    HW = H * W
    f32 = jnp.float32

    # Keep HBM I/O in the native dtype (no wrapper casts of the big tensors).
    xr = x.reshape(N, C, HW)                    # NCHW kept: C on sublanes, HW on lanes
    er = edge.reshape(N, C, HW)
    w1 = fc1_w.reshape(C, C).astype(f32)        # (C_out, C_in); tiny, cast is free
    w2 = fc2_w.reshape(C, C).astype(f32)

    if tile_hw is None:
        tile_hw = _pick_tile_hw(HW, C, er.dtype.itemsize, tile_bytes)
    if tile_hw >= HW:
        tile_hw = HW
    else:
        tile_hw = max(128, (tile_hw // 128) * 128)
    n_tiles = int(pl.cdiv(HW, tile_hw))
    ragged = (HW % tile_hw) != 0

    # ---- 1) fused global avg/max pooling of `edge` + excitation MLP -> s (N, C, 1) ----
    s = pl.pallas_call(
        functools.partial(_pool_excite_kernel, HW, tile_hw, ragged),
        out_shape=jax.ShapeDtypeStruct((N, C, 1), f32),
        grid=(N, n_tiles),
        in_specs=[pl.BlockSpec((1, C, tile_hw), lambda n, t: (n, 0, t)),
                  pl.BlockSpec((C, C), lambda n, t: (0, 0)),
                  pl.BlockSpec((C, C), lambda n, t: (0, 0))],
        out_specs=pl.BlockSpec((1, C, 1), lambda n, t: (n, 0, 0)),
        scratch_shapes=[pltpu.VMEM((1, C, tile_hw), f32),
                        pltpu.VMEM((1, C, tile_hw), f32)],
        compiler_params=pltpu.CompilerParams(
            dimension_semantics=("parallel", "arbitrary"),
            vmem_limit_bytes=vmem_limit_bytes),
    )(er, w1, w2)

    # ---- 2) out = x * s, broadcast over spatial, tiled over H*W ----
    out = pl.pallas_call(
        _apply_kernel,
        out_shape=jax.ShapeDtypeStruct((N, C, HW), x.dtype),
        grid=(N, n_tiles),
        in_specs=[pl.BlockSpec((1, C, tile_hw), lambda n, t: (n, 0, t)),
                  pl.BlockSpec((1, C, 1), lambda n, t: (n, 0, 0))],
        out_specs=pl.BlockSpec((1, C, tile_hw), lambda n, t: (n, 0, t)),
        compiler_params=pltpu.CompilerParams(
            dimension_semantics=("parallel", "parallel"),
            vmem_limit_bytes=vmem_limit_bytes),
    )(xr, s)

    return out.reshape(N, C, H, W)


# --------------------------- pure-JAX reference -------------------------------

def reference_forward(x, edge, fc1_w, fc2_w):
    f32 = jnp.float32
    C = x.shape[1]
    w1 = fc1_w.reshape(C, C).astype(f32)
    w2 = fc2_w.reshape(C, C).astype(f32)
    e = edge.astype(f32)
    avg = e.mean(axis=(2, 3))                        # (N, C)
    mx = e.max(axis=(2, 3))                          # (N, C)

    def mlp(p):
        return jnp.maximum(p @ w1.T, 0.0) @ w2.T

    s = jax.nn.sigmoid(mlp(avg) + mlp(mx))           # (N, C)
    return x.astype(f32) * s[:, :, None, None]


# ----------------------------------- main -------------------------------------

if __name__ == "__main__":
    key = jax.random.PRNGKey(0)
    kx, ke, k1, k2 = jax.random.split(key, 4)

    # (N, C, H, W, dtype, explicit tile_hw, atol, rtol)
    configs = [
        (2, 32, 16, 16, jnp.float32, 128, 1e-4, 1e-4),    # 2 even tiles: cross-tile accumulation
        (2, 32, 12, 12, jnp.float32, 128, 1e-4, 1e-4),    # ragged last tile (144 = 128 + 16)
        (2, 32, 16, 16, jnp.bfloat16, None, 2e-2, 2e-2),  # bf16 on the wire, auto tile
    ]

    for (N, C, H, W, dt, thw, atol, rtol) in configs:
        x = jax.random.normal(kx, (N, C, H, W), jnp.float32).astype(dt)
        edge = jax.random.normal(ke, (N, C, H, W), jnp.float32).astype(dt)
        fc1_w = (0.2 * jax.random.normal(k1, (C, C, 1, 1), jnp.float32))   # Conv2d(C, C, 1, bias=False)
        fc2_w = (0.2 * jax.random.normal(k2, (C, C, 1, 1), jnp.float32))

        out = jax.block_until_ready(
            edge_weight_attention(x, edge, fc1_w, fc2_w, tile_hw=thw))
        assert out.dtype == x.dtype, f"dtype changed: {out.dtype} vs {x.dtype}"

        ref = jax.block_until_ready(reference_forward(x, edge, fc1_w, fc2_w))
        o = np.asarray(out.astype(jnp.float32))
        r = np.asarray(ref)
        if not np.allclose(o, r, atol=atol, rtol=rtol):
            err = float(np.max(np.abs(o - r)))
            raise AssertionError(
                f"Pallas output mismatch vs reference for shape {(N, C, H, W)} "
                f"dtype={dt}, max abs err={err}")

    print("KERNEL_OK")
</pallas_src>

<mosaic_0001>
module attributes {stable_mosaic.version = 11 : i64} {
  func.func @_pool_excite_kernel(%arg0: i32, %arg1: i32, %arg2: memref<1x32x128xf32, #tpu.memory_space<vmem>>, %arg3: memref<32x32xf32, #tpu.memory_space<vmem>>, %arg4: memref<32x32xf32, #tpu.memory_space<vmem>>, %arg5: memref<1x32x1xf32, #tpu.memory_space<vmem>>, %arg6: memref<1x32x128xf32, #tpu.memory_space<vmem>>, %arg7: memref<1x32x128xf32, #tpu.memory_space<vmem>>) attributes {dimension_semantics = [#tpu.dimension_semantics<parallel>, #tpu.dimension_semantics<arbitrary>], iteration_bounds = array<i64: 2, 2>, scalar_prefetch = 0 : i64, scratch_operands = 2 : i64, tpu.core_type = #tpu.core_type<tc>, window_params = [{transform_indices = @transform_0, window_bounds = array<i64: 1, 32, 128>}, {pipeline_mode = #tpu.pipeline_mode<synchronous>, transform_indices = @transform_1, window_bounds = array<i64: 32, 32>}, {pipeline_mode = #tpu.pipeline_mode<synchronous>, transform_indices = @transform_2, window_bounds = array<i64: 32, 32>}, {transform_indices = @transform_3, window_bounds = array<i64: 1, 32, 1>}]} {
    %c0_i32 = arith.constant 0 : i32
    %0 = arith.cmpi eq, %arg1, %c0_i32 : i32
    %1 = arith.extui %0 : i1 to i32
    %c0_i32_0 = arith.constant 0 : i32
    %2 = arith.cmpi ne, %1, %c0_i32_0 : i32
    scf.if %2 {
      %cst = arith.constant 0.000000e+00 : f32
      %13 = vector.broadcast %cst : f32 to vector<1x32x128xf32>
      %c0_16 = arith.constant 0 : index
      %c0_17 = arith.constant 0 : index
      %c0_18 = arith.constant 0 : index
      %14 = vector.load %arg6[%c0_16, %c0_17, %c0_18] : memref<1x32x128xf32, #tpu.memory_space<vmem>>, vector<1x32x128xf32>
      tpu.vector_store %arg6[%c0_16, %c0_17, %c0_18], %13 {strides = array<i32>} : memref<1x32x128xf32, #tpu.memory_space<vmem>>, vector<1x32x128xf32>,
      %cst_19 = arith.constant 0xFF800000 : f32
      %15 = vector.broadcast %cst_19 : f32 to vector<1x32x128xf32>
      %c0_20 = arith.constant 0 : index
      %c0_21 = arith.constant 0 : index
      %c0_22 = arith.constant 0 : index
      %16 = vector.load %arg7[%c0_20, %c0_21, %c0_22] : memref<1x32x128xf32, #tpu.memory_space<vmem>>, vector<1x32x128xf32>
      tpu.vector_store %arg7[%c0_20, %c0_21, %c0_22], %15 {strides = array<i32>} : memref<1x32x128xf32, #tpu.memory_space<vmem>>, vector<1x32x128xf32>,
    } else {
    }
    %c0 = arith.constant 0 : index
    %c0_1 = arith.constant 0 : index
    %c0_2 = arith.constant 0 : index
    %3 = vector.load %arg2[%c0, %c0_1, %c0_2] : memref<1x32x128xf32, #tpu.memory_space<vmem>>, vector<1x32x128xf32>
    %c0_3 = arith.constant 0 : index
    %c0_4 = arith.constant 0 : index
    %c0_5 = arith.constant 0 : index
    %4 = vector.load %arg6[%c0_3, %c0_4, %c0_5] : memref<1x32x128xf32, #tpu.memory_space<vmem>>, vector<1x32x128xf32>
    %5 = arith.addf %4, %3 : vector<1x32x128xf32>
    %c0_6 = arith.constant 0 : index
    %c0_7 = arith.constant 0 : index
    %c0_8 = arith.constant 0 : index
    %6 = vector.load %arg6[%c0_6, %c0_7, %c0_8] : memref<1x32x128xf32, #tpu.memory_space<vmem>>, vector<1x32x128xf32>
    tpu.vector_store %arg6[%c0_6, %c0_7, %c0_8], %5 {strides = array<i32>} : memref<1x32x128xf32, #tpu.memory_space<vmem>>, vector<1x32x128xf32>,
    %c0_9 = arith.constant 0 : index
    %c0_10 = arith.constant 0 : index
    %c0_11 = arith.constant 0 : index
    %7 = vector.load %arg7[%c0_9, %c0_10, %c0_11] : memref<1x32x128xf32, #tpu.memory_space<vmem>>, vector<1x32x128xf32>
    %8 = arith.maximumf %7, %3 : vector<1x32x128xf32>
    %c0_12 = arith.constant 0 : index
    %c0_13 = arith.constant 0 : index
    %c0_14 = arith.constant 0 : index
    %9 = vector.load %arg7[%c0_12, %c0_13, %c0_14] : memref<1x32x128xf32, #tpu.memory_space<vmem>>, vector<1x32x128xf32>
    tpu.vector_store %arg7[%c0_12, %c0_13, %c0_14], %8 {strides = array<i32>} : memref<1x32x128xf32, #tpu.memory_space<vmem>>, vector<1x32x128xf32>,
    %c1_i32 = arith.constant 1 : i32
    %10 = arith.cmpi eq, %arg1, %c1_i32 : i32
    %11 = arith.extui %10 : i1 to i32
    %c0_i32_15 = arith.constant 0 : i32
    %12 = arith.cmpi ne, %11, %c0_i32_15 : i32
    scf.if %12 {
      %c0_16 = arith.constant 0 : index
      %c0_17 = arith.constant 0 : index
      %c0_18 = arith.constant 0 : index
      %13 = vector.load %arg6[%c0_16, %c0_17, %c0_18] : memref<1x32x128xf32, #tpu.memory_space<vmem>>, vector<1x32x128xf32>
      %14 = vector.shape_cast %13 : vector<1x32x128xf32> to vector<32x128xf32>
      %cst = arith.constant dense<0.000000e+00> : vector<32xf32>
      %15 = vector.multi_reduction <add>, %14, %cst [1] : vector<32x128xf32> to vector<32xf32>
      %16 = vector.shape_cast %15 : vector<32xf32> to vector<32x1xf32>
      %cst_19 = arith.constant 3.906250e-03 : f32
      %17 = vector.broadcast %cst_19 : f32 to vector<32x1xf32>
      %18 = arith.mulf %16, %17 : vector<32x1xf32>
      %c0_20 = arith.constant 0 : index
      %c0_21 = arith.constant 0 : index
      %c0_22 = arith.constant 0 : index
      %19 = vector.load %arg7[%c0_20, %c0_21, %c0_22] : memref<1x32x128xf32, #tpu.memory_space<vmem>>, vector<1x32x128xf32>
      %20 = vector.shape_cast %19 : vector<1x32x128xf32> to vector<32x128xf32>
      %cst_23 = arith.constant dense<0xFF800000> : vector<32xf32>
      %21 = vector.multi_reduction <maximumf>, %20, %cst_23 [1] : vector<32x128xf32> to vector<32xf32>
      %22 = vector.shape_cast %21 : vector<32xf32> to vector<32x1xf32>
      %c0_24 = arith.constant 0 : index
      %c0_25 = arith.constant 0 : index
      %23 = vector.load %arg3[%c0_24, %c0_25] : memref<32x32xf32, #tpu.memory_space<vmem>>, vector<32x32xf32>
      %c0_26 = arith.constant 0 : index
      %c0_27 = arith.constant 0 : index
      %24 = vector.load %arg4[%c0_26, %c0_27] : memref<32x32xf32, #tpu.memory_space<vmem>>, vector<32x32xf32>
      %cst_28 = arith.constant dense<0.000000e+00> : vector<32x1xf32>
      %25 = tpu.matmul %23, %18, %cst_28 {dimension_numbers = #tpu.dot_dimension_numbers<[1], [0], [0], [1], [0, 0, 1, 1], [], []>} : vector<32x32xf32>, vector<32x1xf32>, vector<32x1xf32> -> vector<32x1xf32>
      %cst_29 = arith.constant 0.000000e+00 : f32
      %26 = vector.broadcast %cst_29 : f32 to vector<32x1xf32>
      %27 = arith.maximumf %25, %26 : vector<32x1xf32>
      %cst_30 = arith.constant dense<0.000000e+00> : vector<32x1xf32>
      %28 = tpu.matmul %23, %22, %cst_30 {dimension_numbers = #tpu.dot_dimension_numbers<[1], [0], [0], [1], [0, 0, 1, 1], [], []>} : vector<32x32xf32>, vector<32x1xf32>, vector<32x1xf32> -> vector<32x1xf32>
      %cst_31 = arith.constant 0.000000e+00 : f32
      %29 = vector.broadcast %cst_31 : f32 to vector<32x1xf32>
      %30 = arith.maximumf %28, %29 : vector<32x1xf32>
      %31 = arith.addf %27, %30 : vector<32x1xf32>
      %cst_32 = arith.constant dense<0.000000e+00> : vector<32x1xf32>
      %32 = tpu.matmul %24, %31, %cst_32 {dimension_numbers = #tpu.dot_dimension_numbers<[1], [0], [0], [1], [0, 0, 1, 1], [], []>} : vector<32x32xf32>, vector<32x1xf32>, vector<32x1xf32> -> vector<32x1xf32>
      %33 = arith.negf %32 : vector<32x1xf32>
      %34 = math.exp %33 : vector<32x1xf32>
      %cst_33 = arith.constant 1.000000e+00 : f32
      %35 = vector.broadcast %cst_33 : f32 to vector<32x1xf32>
      %36 = arith.addf %35, %34 : vector<32x1xf32>
      %37 = arith.divf %35, %36 : vector<32x1xf32>
      %c0_34 = arith.constant 0 : index
      %c0_35 = arith.constant 0 : index
      %c0_36 = arith.constant 0 : index
      %38 = vector.load %arg5[%c0_34, %c0_35, %c0_36] : memref<1x32x1xf32, #tpu.memory_space<vmem>>, vector<1x32x1xf32>
      %39 = vector.shape_cast %38 : vector<1x32x1xf32> to vector<32x1xf32>
      %40 = vector.shape_cast %37 : vector<32x1xf32> to vector<1x32x1xf32>
      tpu.vector_store %arg5[%c0_34, %c0_35, %c0_36], %40 {strides = array<i32>} : memref<1x32x1xf32, #tpu.memory_space<vmem>>, vector<1x32x1xf32>,
    } else {
    }
    return
  }
  func.func @transform_0(%arg0: i32, %arg1: i32) -> (i32, i32, i32) {
    %c0_i32 = arith.constant 0 : i32
    %c0_i32_0 = arith.constant 0 : i32
    return %arg0, %c0_i32, %arg1 : i32, i32, i32
  }
  func.func @transform_1(%arg0: i32, %arg1: i32) -> (i32, i32) {
    %c0_i32 = arith.constant 0 : i32
    %c0_i32_0 = arith.constant 0 : i32
    %c0_i32_1 = arith.constant 0 : i32
    return %c0_i32, %c0_i32_0 : i32, i32
  }
  func.func @transform_2(%arg0: i32, %arg1: i32) -> (i32, i32) {
    %c0_i32 = arith.constant 0 : i32
    %c0_i32_0 = arith.constant 0 : i32
    %c0_i32_1 = arith.constant 0 : i32
    return %c0_i32, %c0_i32_0 : i32, i32
  }
  func.func @transform_3(%arg0: i32, %arg1: i32) -> (i32, i32, i32) {
    %c0_i32 = arith.constant 0 : i32
    %c0_i32_0 = arith.constant 0 : i32
    %c0_i32_1 = arith.constant 0 : i32
    return %arg0, %c0_i32, %c0_i32_0 : i32, i32, i32
  }
}

module attributes {stable_mosaic.version = 11 : i64} {
  func.func @_apply_kernel(%arg0: i32, %arg1: i32, %arg2: memref<1x32x128xf32, #tpu.memory_space<vmem>>, %arg3: memref<1x32x1xf32, #tpu.memory_space<vmem>>, %arg4: memref<1x32x128xf32, #tpu.memory_space<vmem>>) attributes {dimension_semantics = [#tpu.dimension_semantics<parallel>, #tpu.dimension_semantics<parallel>], iteration_bounds = array<i64: 2, 2>, scalar_prefetch = 0 : i64, scratch_operands = 0 : i64, tpu.core_type = #tpu.core_type<tc>, window_params = [{transform_indices = @transform_0, window_bounds = array<i64: 1, 32, 128>}, {transform_indices = @transform_1, window_bounds = array<i64: 1, 32, 1>}, {transform_indices = @transform_2, window_bounds = array<i64: 1, 32, 128>}]} {
    %c0 = arith.constant 0 : index
    %c0_0 = arith.constant 0 : index
    %c0_1 = arith.constant 0 : index
    %0 = vector.load %arg2[%c0, %c0_0, %c0_1] : memref<1x32x128xf32, #tpu.memory_space<vmem>>, vector<1x32x128xf32>
    %c0_2 = arith.constant 0 : index
    %c0_3 = arith.constant 0 : index
    %c0_4 = arith.constant 0 : index
    %1 = vector.load %arg3[%c0_2, %c0_3, %c0_4] : memref<1x32x1xf32, #tpu.memory_space<vmem>>, vector<1x32x1xf32>
    %2 = vector.broadcast %1 : vector<1x32x1xf32> to vector<1x32x128xf32>
    %3 = arith.mulf %0, %2 : vector<1x32x128xf32>
    %c0_5 = arith.constant 0 : index
    %c0_6 = arith.constant 0 : index
    %c0_7 = arith.constant 0 : index
    %4 = vector.load %arg4[%c0_5, %c0_6, %c0_7] : memref<1x32x128xf32, #tpu.memory_space<vmem>>, vector<1x32x128xf32>
    tpu.vector_store %arg4[%c0_5, %c0_6, %c0_7], %3 {strides = array<i32>} : memref<1x32x128xf32, #tpu.memory_space<vmem>>, vector<1x32x128xf32>,
    return
  }
  func.func @transform_0(%arg0: i32, %arg1: i32) -> (i32, i32, i32) {
    %c0_i32 = arith.constant 0 : i32
    %c0_i32_0 = arith.constant 0 : i32
    return %arg0, %c0_i32, %arg1 : i32, i32, i32
  }
  func.func @transform_1(%arg0: i32, %arg1: i32) -> (i32, i32, i32) {
    %c0_i32 = arith.constant 0 : i32
    %c0_i32_0 = arith.constant 0 : i32
    %c0_i32_1 = arith.constant 0 : i32
    return %arg0, %c0_i32, %c0_i32_0 : i32, i32, i32
  }
  func.func @transform_2(%arg0: i32, %arg1: i32) -> (i32, i32, i32) {
    %c0_i32 = arith.constant 0 : i32
    %c0_i32_0 = arith.constant 0 : i32
    return %arg0, %c0_i32, %arg1 : i32, i32, i32
  }
}

</mosaic_0001>

<llo_original>
// kernel: edge_weight_attention.3
$region0: #{edge_weight_attention.3}
  #allocation0 [shape = 'u32[]', space=smem, size = 0x4, offset = 0x4, fixed_abs, tag = 'smem constant byte address 0x4 - core index']
  #allocation1 [shape = 'u32[72,128]{1,0:T(1,128)}', space=vmem, size = 0x9000, scoped, tag = 'internal scratch']
  %s0 = inlined_call_operand.vmem [shape: f32[2,32,256], index: 0, kind: input, shape index: {}]
  %s1 = inlined_call_operand.vmem [shape: f32[2,32,1], index: 1, kind: input, shape index: {}]
  %s2 = inlined_call_operand.vmem [shape: f32[2,32,256], index: 2, kind: output, shape index: {}]
  %s3 = sld [smem:[#allocation0]]
  $region113: #{edge_weight_attention.3} parent=0
    _
  %s5 = ssub.s32 1, %s3
  %s6 = scalar_select 0, %s5, %s3
  $region1: #{edge_weight_attention.3} parent=0
    #allocation2 [shape = 'u8[32768]{0}', space=vmem, size = 0x8000, scoped, tag = 'input window, operand 0']
    #allocation3 [shape = 'u8[32768]{0}', space=vmem, size = 0x8000, scoped, tag = 'output window, operand 0']
    loop: start=0, step=1, limit=6
    $region2: #{edge_weight_attention.3} parent=1 // loop_pre_header
      _
    $region3: #{edge_weight_attention.3} parent=1 // loop_header
      %s8 = sphi 0, %s12
      %p9 = scmp.ge.s32.totalorder %s8, 6
      %s15 = sphi 0, %s27
      %s16 = sphi 0, %s23
      %s17 = sphi 0, %s15
      %s18 = sphi 0, %s16
      %s19 = sphi 0, %s17
      %s20 = sphi 0, %s18
      %s32 = sphi 0, %s34
      %s35 = sphi 0, %s32
      %s36 = sphi 0, %s35
      %s52 = sphi 0, %s36
      %s58 = sphi 0, %s60
      %s61 = sphi 0, %s58
      %s62 = sphi 0, %s61
      %s78 = sphi 0, %s62
      %s86 = sphi 0, %s88
      %s89 = sphi 0, %s86
      %s90 = sphi 0, %s89
      %s106 = sphi 0, %s90
    $region4: #{edge_weight_attention.3} parent=1 // loop_header_branch
      %11 = sbr.rel (%p9) target = $region8
    $region5: #{edge_weight_attention.3} parent=1 // loop_body
      %s13 = ssub.s32 %s8, 1
      %s14 = ssub.s32 %s8, 2
      %s21 = sadd.s32 1, %s16
      %p22 = scmp.ge.s32.totalorder %s21, 2
      %s23 = scalar_select %p22, 0, %s21
      %s24 = sadd.s32 1, %s15
      %s25 = scalar_select %p22, %s24, %s15
      %p26 = scmp.ge.s32.totalorder %s25, 2
      %s27 = scalar_select %p26, 0, %s25
      %s28 = ssub.s32 %s15, %s27
      %s29 = ssub.s32 %s16, %s23
      %s30 = sor.u32 %s28, %s29
      %p31 = scmp.eq.s32.totalorder %s30, 0
      %s33 = sadd.s32 %s32, 1
      %s34 = scalar_select %p31, %s32, %s33
      %p37 = pneg %p31
      %p38 = scmp.eq.s32.totalorder %s8, 3
      %p39 = por %p37, %p38
      %p40 = scmp.ne.s32.totalorder %s32, %s35
      %p41 = scmp.eq.s32.totalorder %s8, 0
      %p42 = por %p40, %p41
      %p43 = scmp.ne.s32.totalorder %s32, %s35
      %p44 = scmp.eq.s32.totalorder %s13, 3
      %p45 = por %p43, %p44
      %p46 = scmp.ne.s32.totalorder %s35, %s36
      %p47 = scmp.eq.s32.totalorder %s13, 0
      %p48 = por %p46, %p47
      %p49 = scmp.ne.s32.totalorder %s35, %s36
      %p50 = scmp.eq.s32.totalorder %s14, 3
      %p51 = por %p49, %p50
      %p53 = scmp.ne.s32.totalorder %s36, %s52
      %p54 = scmp.eq.s32.totalorder %s14, 0
      %p55 = por %p53, %p54
      %s56 = ssub.s32 %s15, %s27
      %p57 = scmp.eq.s32.totalorder %s56, 0
      %s59 = sadd.s32 %s58, 1
      %s60 = scalar_select %p57, %s58, %s59
      %p63 = pneg %p57
      %p64 = scmp.eq.s32.totalorder %s8, 3
      %p65 = por %p63, %p64
      %p66 = scmp.ne.s32.totalorder %s58, %s61
      %p67 = scmp.eq.s32.totalorder %s8, 0
      %p68 = por %p66, %p67
      %p69 = scmp.ne.s32.totalorder %s58, %s61
      %p70 = scmp.eq.s32.totalorder %s13, 3
      %p71 = por %p69, %p70
      %p72 = scmp.ne.s32.totalorder %s61, %s62
      %p73 = scmp.eq.s32.totalorder %s13, 0
      %p74 = por %p72, %p73
      %p75 = scmp.ne.s32.totalorder %s61, %s62
      %p76 = scmp.eq.s32.totalorder %s14, 3
      %p77 = por %p75, %p76
      %p79 = scmp.ne.s32.totalorder %s62, %s78
      %p80 = scmp.eq.s32.totalorder %s14, 0
      %p81 = por %p79, %p80
      %s82 = ssub.s32 %s15, %s27
      %s83 = ssub.s32 %s16, %s23
      %s84 = sor.u32 %s82, %s83
      %p85 = scmp.eq.s32.totalorder %s84, 0
      %s87 = sadd.s32 %s86, 1
      %s88 = scalar_select %p85, %s86, %s87
      %p91 = pneg %p85
      %p92 = scmp.eq.s32.totalorder %s8, 3
      %p93 = por %p91, %p92
      %p94 = scmp.ne.s32.totalorder %s86, %s89
      %p95 = scmp.eq.s32.totalorder %s8, 0
      %p96 = por %p94, %p95
      %p97 = scmp.ne.s32.totalorder %s86, %s89
      %p98 = scmp.eq.s32.totalorder %s13, 3
      %p99 = por %p97, %p98
      %p100 = scmp.ne.s32.totalorder %s89, %s90
      %p101 = scmp.eq.s32.totalorder %s13, 0
      %p102 = por %p100, %p101
      %p103 = scmp.ne.s32.totalorder %s89, %s90
      %p104 = scmp.eq.s32.totalorder %s14, 3
      %p105 = por %p103, %p104
      %p107 = scmp.ne.s32.totalorder %s90, %s106
      %p108 = scmp.eq.s32.totalorder %s14, 0
      %p109 = por %p107, %p108
      %p110 = scmp.le.s32.totalorder 1, %s8
      %p111 = scmp.lt.s32.totalorder %s8, 5
      %p112 = pnand %p110, %p111
      %p113 = pneg %p112
      // Predicated region
      $region9: #{edge_weight_attention.3} parent=5 // pred_check
        _
      $region10: #{edge_weight_attention.3} parent=5 // pred_check_branch
        %115 = sbr.rel (%p112) target = $region12
      $region11: #{edge_weight_attention.3} parent=5 // pred_region
        %s116 = ssub.s32 %s8, 1
      $region12: #{edge_weight_attention.3} parent=5 // pred_fallthru
        _
      %p117 = scmp.lt.s32.totalorder %s8, 4
      // Predicated region
      $region13: #{edge_weight_attention.3} parent=5 // pred_check
        %p118 = pneg %p117
      $region14: #{edge_weight_attention.3} parent=5 // pred_check_branch
        %120 = sbr.rel (%p118) target = $region16
      $region15: #{edge_weight_attention.3} parent=5 // pred_region
        // Predicated region
        $region17: #{edge_weight_attention.3} parent=15 // pred_check
          %p121 = pneg %p42
        $region18: #{edge_weight_attention.3} parent=15 // pred_check_branch
          %123 = sbr.rel (%p121) target = $region20
        $region19: #{edge_weight_attention.3} parent=15 // pred_region
          %s124 = sand.u32 %s32, 1
          %s125 = sand.u32 %s32, 1
          %s126 = smul.addr %s125, 32
          %s127 = scalar_lea.vmem [#allocation2], %s126
          %s128 = smul.addr %s15, 8
          %s129 = sadd.s32 %s16, %s128
          %s130 = smul.addr %s129, 8
          %s131 = scalar_lea.vmem %s0, %s130
          // Predicated region
          $region21: #{edge_weight_attention.3} parent=19 // pred_check
            _
          $region22: #{edge_weight_attention.3} parent=19 // pred_check_branch
            %133 = sbr.rel (0) target = $region24
          $region23: #{edge_weight_attention.3} parent=19 // pred_region
            // Predicated region
            $region25: #{edge_weight_attention.3} parent=23 // pred_check
              _
            $region26: #{edge_weight_attention.3} parent=23 // pred_check_branch
              %135 = sbr.rel (0) target = $region28
            $region27: #{edge_weight_attention.3} parent=23 // pred_region
              // Predicated region
              $region40: #{edge_weight_attention.3} parent=27 // pred_check
                _
              $region41: #{edge_weight_attention.3} parent=27 // pred_check_branch
                %157 = sbr.rel (0) target = $region43
              $region42: #{edge_weight_attention.3} parent=27 // pred_region
                loop: start=0, step=1, limit=1
                $region44: #{edge_weight_attention.3} parent=42 // loop_pre_header
                  _
                $region45: #{edge_weight_attention.3} parent=42 // loop_header
                  %s159 = sphi 0, %s163
                  %p160 = scmp.ge.s32.totalorder %s159, 1
                  %s164 = sphi %s131, %s131
                  %s165 = sphi %s127, %s127
                $region46: #{edge_weight_attention.3} parent=42 // loop_header_branch
                  %162 = sbr.rel (%p160) target = $region50
                $region47: #{edge_weight_attention.3} parent=42 // loop_body
                  %v166 = vld [vmem:[%s164] sm:$0xff]
                  %167 = vst [vmem:[%s165] sm:$0xff] %v166
                  %v168 = vld [vmem:[%s164 + $0x10] sm:$0xff]
                  %169 = vst [vmem:[%s165 + $0x8] sm:$0xff] %v168
                  %v170 = vld [vmem:[%s164 + $0x20] sm:$0xff]
                  %171 = vst [vmem:[%s165 + $0x10] sm:$0xff] %v170
                  %v172 = vld [vmem:[%s164 + $0x30] sm:$0xff]
                  %173 = vst [vmem:[%s165 + $0x18] sm:$0xff] %v172
                $region48: #{edge_weight_attention.3} parent=42 // loop_footer
                  %s163 = sadd.s32 1, %s159
                $region49: #{edge_weight_attention.3} parent=42 // loop_footer_branch
                  %158 = sbr.rel target = $region45
                $region50: #{edge_weight_attention.3} parent=42 // loop_exit
                  _
              $region43: #{edge_weight_attention.3} parent=27 // pred_fallthru
                _
              // Predicated region
              $region51: #{edge_weight_attention.3} parent=27 // pred_check
                _
              $region52: #{edge_weight_attention.3} parent=27 // pred_check_branch
                %175 = sbr.rel target = $region54
              $region53: #{edge_weight_attention.3} parent=27 // pred_region
                _
              $region54: #{edge_weight_attention.3} parent=27 // pred_fallthru
                _
            $region28: #{edge_weight_attention.3} parent=23 // pred_fallthru
              _
            // Predicated region
            $region29: #{edge_weight_attention.3} parent=23 // pred_check
              _
            $region30: #{edge_weight_attention.3} parent=23 // pred_check_branch
              %137 = sbr.rel target = $region32
            $region31: #{edge_weight_attention.3} parent=23 // pred_region
              %s139 = ssub.s32 256, 1
              loop: start=0, step=1, limit=1
              $region33: #{edge_weight_attention.3} parent=31 // loop_pre_header
                _
              $region34: #{edge_weight_attention.3} parent=31 // loop_header
                %s141 = sphi 0, %s145
                %p142 = scmp.ge.s32.totalorder %s141, 1
                %s146 = sphi %s131, %s131
                %s147 = sphi %s127, %s127
              $region35: #{edge_weight_attention.3} parent=31 // loop_header_branch
                %144 = sbr.rel (%p142) target = $region39
              $region36: #{edge_weight_attention.3} parent=31 // loop_body
                %v148 = vld [vmem:[%s146] sm:%s139]
                %149 = vst [vmem:[%s147] sm:%s139] %v148
                %v150 = vld [vmem:[%s146 + $0x10] sm:%s139]
                %151 = vst [vmem:[%s147 + $0x8] sm:%s139] %v150
                %v152 = vld [vmem:[%s146 + $0x20] sm:%s139]
                %153 = vst [vmem:[%s147 + $0x10] sm:%s139] %v152
                %v154 = vld [vmem:[%s146 + $0x30] sm:%s139]
                %155 = vst [vmem:[%s147 + $0x18] sm:%s139] %v154
              $region37: #{edge_weight_attention.3} parent=31 // loop_footer
                %s145 = sadd.s32 1, %s141
              $region38: #{edge_weight_attention.3} parent=31 // loop_footer_branch
                %140 = sbr.rel target = $region34
              $region39: #{edge_weight_attention.3} parent=31 // loop_exit
                _
            $region32: #{edge_weight_attention.3} parent=23 // pred_fallthru
              _
          $region24: #{edge_weight_attention.3} parent=19 // pred_fallthru
            _
          %176 = vnop
        $region20: #{edge_weight_attention.3} parent=15 // pred_fallthru
          _
        // Predicated region
        $region55: #{edge_weight_attention.3} parent=15 // pred_check
          %p177 = pneg %p68
        $region56: #{edge_weight_attention.3} parent=15 // pred_check_branch
          %179 = sbr.rel (%p177) target = $region58
        $region57: #{edge_weight_attention.3} parent=15 // pred_region
          %p180 = scmp.lt.s32.totalorder %s15, 1
          %s181 = scalar_select %p180, %s15, 1
          %s182 = smul.addr %s181, 4
          %s183 = smul.addr %s182, 8
          %s184 = scalar_lea.vmem %s1, %s183
        $region58: #{edge_weight_attention.3} parent=15 // pred_fallthru
          _
      $region16: #{edge_weight_attention.3} parent=5 // pred_fallthru
        _
      %p185 = scmp.le.s32.totalorder 1, %s8
      %p186 = scmp.lt.s32.totalorder %s8, 5
      %p187 = pnand %p185, %p186
      %p188 = pneg %p187
      // Predicated region
      $region59: #{edge_weight_attention.3} parent=5 // pred_check
        _
      $region60: #{edge_weight_attention.3} parent=5 // pred_check_branch
        %190 = sbr.rel (%p187) target = $region62
      $region61: #{edge_weight_attention.3} parent=5 // pred_region
        %s191 = ssub.s32 %s8, 1
        %s192 = sand.u32 %s35, 1
        %s193 = sand.u32 %s35, 1
        %s194 = smul.addr %s193, 32
        %s195 = scalar_lea.vmem [#allocation2], %s194
        // Predicated region
        $region63: #{edge_weight_attention.3} parent=61 // pred_check
          %p196 = pneg %p48
        $region64: #{edge_weight_attention.3} parent=61 // pred_check_branch
          %198 = sbr.rel (%p196) target = $region66
        $region65: #{edge_weight_attention.3} parent=61 // pred_region
          _
        $region66: #{edge_weight_attention.3} parent=61 // pred_fallthru
          _
        %s199 = sand.u32 %s35, 1
        %s200 = sand.u32 %s35, 1
        %s201 = smul.addr %s200, 32
        %s202 = scalar_lea.vmem [#allocation2], %s201
        %p203 = pneg %p48
        %p204 = pneg %p45
        %p205 = scmp.lt.s32.totalorder %s17, 1
        %s206 = scalar_select %p205, %s17, 1
        %s207 = smul.addr %s206, 4
        %s208 = smul.addr %s207, 8
        %s209 = scalar_lea.vmem %s1, %s208
        %p210 = pneg %p74
        %p211 = pneg %p71
        %p212 = pneg %p102
        %p213 = pneg %p99
        %s214 = sand.u32 %s89, 1
        %s215 = sand.u32 %s89, 1
        %s216 = smul.addr %s215, 32
        %s217 = scalar_lea.vmem [#allocation3], %s216
        %p218 = scmp.lt.s32.totalorder %s17, 1
        %s219 = scalar_select %p218, %s17, 1
        %s220 = smul.addr %s219, 4
        %s221 = smul.addr %s220, 8
        %s222 = scalar_lea.vmem %s1, %s221
        %v223 = vld [vmem:[%s195] sm:$0xff]
        %v224 = vld [vmem:[%s195 + $0x8] sm:$0xff]
        %v225 = vld [vmem:[%s195 + $0x10] sm:$0xff]
        %v226 = vld [vmem:[%s195 + $0x18] sm:$0xff]
        %v227 = vld [vmem:[%s222] sm:$0xff]
        %v228 = vld [vmem:[%s222 + $0x8] sm:$0xff]
        %v229 = vld [vmem:[%s222 + $0x10] sm:$0xff]
        %v230 = vld [vmem:[%s222 + $0x18] sm:$0xff]
        %232 = vset.pattern.permute.xlu0 0
        %233 = vperm.xlu0 %232, %v227
        %v234 = vpop.permute.xlu0 %233
        %237 = vset.pattern.permute.xlu0 0
        %238 = vperm.xlu0 %237, %v228
        %v239 = vpop.permute.xlu0 %238
        %242 = vset.pattern.permute.xlu0 0
        %243 = vperm.xlu0 %242, %v229
        %v244 = vpop.permute.xlu0 %243
        %247 = vset.pattern.permute.xlu0 0
        %248 = vperm.xlu0 %247, %v230
        %v249 = vpop.permute.xlu0 %248
        %v251 = vmul.f32 %v223, %v234
        %v252 = vmul.f32 %v224, %v239
        %v253 = vmul.f32 %v225, %v244
        %v254 = vmul.f32 %v226, %v249
        %255 = vst [vmem:[%s217] sm:$0xff] %v251
        %256 = vst [vmem:[%s217 + $0x8] sm:$0xff] %v252
        %257 = vst [vmem:[%s217 + $0x10] sm:$0xff] %v253
        %258 = vst [vmem:[%s217 + $0x18] sm:$0xff] %v254
        %s259 = sand.u32 %s89, 1
        %s260 = sand.u32 %s89, 1
        %s261 = smul.addr %s260, 32
        %s262 = scalar_lea.vmem [#allocation3], %s261
        // Predicated region
        $region67: #{edge_weight_attention.3} parent=61 // pred_check
          %p263 = pneg %p99
        $region68: #{edge_weight_attention.3} parent=61 // pred_check_branch
          %265 = sbr.rel (%p263) target = $region70
        $region69: #{edge_weight_attention.3} parent=61 // pred_region
          %s266 = smul.addr %s17, 8
          %s267 = sadd.s32 %s18, %s266
          %s268 = smul.addr %s267, 8
          %s269 = scalar_lea.vmem %s2, %s268
          // Predicated region
          $region71: #{edge_weight_attention.3} parent=69 // pred_check
            _
          $region72: #{edge_weight_attention.3} parent=69 // pred_check_branch
            %271 = sbr.rel (0) target = $region74
          $region73: #{edge_weight_attention.3} parent=69 // pred_region
            // Predicated region
            $region75: #{edge_weight_attention.3} parent=73 // pred_check
              _
            $region76: #{edge_weight_attention.3} parent=73 // pred_check_branch
              %273 = sbr.rel (0) target = $region78
            $region77: #{edge_weight_attention.3} parent=73 // pred_region
              // Predicated region
              $region90: #{edge_weight_attention.3} parent=77 // pred_check
                _
              $region91: #{edge_weight_attention.3} parent=77 // pred_check_branch
                %295 = sbr.rel (0) target = $region93
              $region92: #{edge_weight_attention.3} parent=77 // pred_region
                loop: start=0, step=1, limit=1
                $region94: #{edge_weight_attention.3} parent=92 // loop_pre_header
                  _
                $region95: #{edge_weight_attention.3} parent=92 // loop_header
                  %s297 = sphi 0, %s301
                  %p298 = scmp.ge.s32.totalorder %s297, 1
                  %s302 = sphi %s262, %s262
                  %s303 = sphi %s269, %s269
                $region96: #{edge_weight_attention.3} parent=92 // loop_header_branch
                  %300 = sbr.rel (%p298) target = $region100
                $region97: #{edge_weight_attention.3} parent=92 // loop_body
                  %v304 = vld [vmem:[%s302] sm:$0xff]
                  %305 = vst [vmem:[%s303] sm:$0xff] %v304
                  %v306 = vld [vmem:[%s302 + $0x8] sm:$0xff]
                  %307 = vst [vmem:[%s303 + $0x10] sm:$0xff] %v306
                  %v308 = vld [vmem:[%s302 + $0x10] sm:$0xff]
                  %309 = vst [vmem:[%s303 + $0x20] sm:$0xff] %v308
                  %v310 = vld [vmem:[%s302 + $0x18] sm:$0xff]
                  %311 = vst [vmem:[%s303 + $0x30] sm:$0xff] %v310
                $region98: #{edge_weight_attention.3} parent=92 // loop_footer
                  %s301 = sadd.s32 1, %s297
                $region99: #{edge_weight_attention.3} parent=92 // loop_footer_branch
                  %296 = sbr.rel target = $region95
                $region100: #{edge_weight_attention.3} parent=92 // loop_exit
                  _
              $region93: #{edge_weight_attention.3} parent=77 // pred_fallthru
                _
              // Predicated region
              $region101: #{edge_weight_attention.3} parent=77 // pred_check
                _
              $region102: #{edge_weight_attention.3} parent=77 // pred_check_branch
                %313 = sbr.rel target = $region104
              $region103: #{edge_weight_attention.3} parent=77 // pred_region
                _
              $region104: #{edge_weight_attention.3} parent=77 // pred_fallthru
                _
            $region78: #{edge_weight_attention.3} parent=73 // pred_fallthru
              _
            // Predicated region
            $region79: #{edge_weight_attention.3} parent=73 // pred_check
              _
            $region80: #{edge_weight_attention.3} parent=73 // pred_check_branch
              %275 = sbr.rel target = $region82
            $region81: #{edge_weight_attention.3} parent=73 // pred_region
              %s277 = ssub.s32 256, 1
              loop: start=0, step=1, limit=1
              $region83: #{edge_weight_attention.3} parent=81 // loop_pre_header
                _
              $region84: #{edge_weight_attention.3} parent=81 // loop_header
                %s279 = sphi 0, %s283
                %p280 = scmp.ge.s32.totalorder %s279, 1
                %s284 = sphi %s262, %s262
                %s285 = sphi %s269, %s269
              $region85: #{edge_weight_attention.3} parent=81 // loop_header_branch
                %282 = sbr.rel (%p280) target = $region89
              $region86: #{edge_weight_attention.3} parent=81 // loop_body
                %v286 = vld [vmem:[%s284] sm:%s277]
                %287 = vst [vmem:[%s285] sm:%s277] %v286
                %v288 = vld [vmem:[%s284 + $0x8] sm:%s277]
                %289 = vst [vmem:[%s285 + $0x10] sm:%s277] %v288
                %v290 = vld [vmem:[%s284 + $0x10] sm:%s277]
                %291 = vst [vmem:[%s285 + $0x20] sm:%s277] %v290
                %v292 = vld [vmem:[%s284 + $0x18] sm:%s277]
                %293 = vst [vmem:[%s285 + $0x30] sm:%s277] %v292
              $region87: #{edge_weight_attention.3} parent=81 // loop_footer
                %s283 = sadd.s32 1, %s279
              $region88: #{edge_weight_attention.3} parent=81 // loop_footer_branch
                %278 = sbr.rel target = $region84
              $region89: #{edge_weight_attention.3} parent=81 // loop_exit
                _
            $region82: #{edge_weight_attention.3} parent=73 // pred_fallthru
              _
          $region74: #{edge_weight_attention.3} parent=69 // pred_fallthru
            _
          %314 = vnop
        $region70: #{edge_weight_attention.3} parent=61 // pred_fallthru
          _
      $region62: #{edge_weight_attention.3} parent=5 // pred_fallthru
        _
      %p315 = scmp.le.s32.totalorder 2, %s8
      // Predicated region
      $region105: #{edge_weight_attention.3} parent=5 // pred_check
        %p316 = pneg %p315
      $region106: #{edge_weight_attention.3} parent=5 // pred_check_branch
        %318 = sbr.rel (%p316) target = $region108
      $region107: #{edge_weight_attention.3} parent=5 // pred_region
        %s319 = ssub.s32 %s8, 2
        // Predicated region
        $region109: #{edge_weight_attention.3} parent=107 // pred_check
          %p320 = pneg %p105
        $region110: #{edge_weight_attention.3} parent=107 // pred_check_branch
          %322 = sbr.rel (%p320) target = $region112
        $region111: #{edge_weight_attention.3} parent=107 // pred_region
          %s323 = sand.u32 %s90, 1
          %s324 = sand.u32 %s90, 1
          %s325 = smul.addr %s324, 32
          %s326 = scalar_lea.vmem [#allocation3], %s325
        $region112: #{edge_weight_attention.3} parent=107 // pred_fallthru
          _
      $region108: #{edge_weight_attention.3} parent=5 // pred_fallthru
        _
    $region6: #{edge_weight_attention.3} parent=1 // loop_footer
      %s12 = sadd.s32 1, %s8
    $region7: #{edge_weight_attention.3} parent=1 // loop_footer_branch
      %7 = sbr.rel target = $region3
    $region8: #{edge_weight_attention.3} parent=1 // loop_exit
      _

// kernel: edge_weight_attention.2
$region0: #{edge_weight_attention.2}
  #allocation0 [shape = 'u32[]', space=smem, size = 0x4, offset = 0x4, fixed_abs, tag = 'smem constant byte address 0x4 - core index']
  #allocation1 [shape = 'u32[72,128]{1,0:T(1,128)}', space=vmem, size = 0x9000, scoped, tag = 'internal scratch']
  #allocation2 [shape = 'f32[1,32,128]{2,1,0:T(8,128)}', space=vmem, size = 0x4000, scoped, tag = 'scratch operand']
  #allocation3 [shape = 'f32[1,32,128]{2,1,0:T(8,128)}', space=vmem, size = 0x4000, scoped, tag = 'scratch operand']
  %s0 = inlined_call_operand.vmem [shape: f32[2,32,256], index: 0, kind: input, shape index: {}]
  %s1 = inlined_call_operand.vmem [shape: f32[32,32], index: 1, kind: input, shape index: {}]
  %s2 = inlined_call_operand.vmem [shape: f32[32,32], index: 2, kind: input, shape index: {}]
  %s3 = inlined_call_operand.vmem [shape: f32[2,32,1], index: 3, kind: output, shape index: {}]
  %s4 = sld [smem:[#allocation0]]
  $region91: #{edge_weight_attention.2} parent=0
    _
  %s6 = ssub.s32 1, %s4
  %s7 = scalar_select 0, %s6, %s4
  $region1: #{edge_weight_attention.2} parent=0
    #allocation4 [shape = 'u8[32768]{0}', space=vmem, size = 0x8000, scoped, tag = 'input window, operand 0']
    loop: start=0, step=1, limit=6
    $region2: #{edge_weight_attention.2} parent=1 // loop_pre_header
      _
    $region3: #{edge_weight_attention.2} parent=1 // loop_header
      %s9 = sphi 0, %s13
      %p10 = scmp.ge.s32.totalorder %s9, 6
      %s16 = sphi 0, %s28
      %s17 = sphi 0, %s24
      %s18 = sphi 0, %s16
      %s19 = sphi 0, %s17
      %s20 = sphi 0, %s18
      %s21 = sphi 0, %s19
      %s33 = sphi 0, %s35
      %s36 = sphi 0, %s33
      %s37 = sphi 0, %s36
      %s53 = sphi 0, %s37
      %s57 = sphi 0, %s57
      %s59 = sphi 0, %s57
      %s60 = sphi 0, %s59
      %s74 = sphi 0, %s60
      %s78 = sphi 0, %s78
      %s80 = sphi 0, %s78
      %s81 = sphi 0, %s80
      %s95 = sphi 0, %s81
      %s101 = sphi 0, %s103
      %s104 = sphi 0, %s101
      %s105 = sphi 0, %s104
      %s121 = sphi 0, %s105
    $region4: #{edge_weight_attention.2} parent=1 // loop_header_branch
      %12 = sbr.rel (%p10) target = $region8
    $region5: #{edge_weight_attention.2} parent=1 // loop_body
      %s14 = ssub.s32 %s9, 1
      %s15 = ssub.s32 %s9, 2
      %s22 = sadd.s32 1, %s17
      %p23 = scmp.ge.s32.totalorder %s22, 2
      %s24 = scalar_select %p23, 0, %s22
      %s25 = sadd.s32 1, %s16
      %s26 = scalar_select %p23, %s25, %s16
      %p27 = scmp.ge.s32.totalorder %s26, 2
      %s28 = scalar_select %p27, 0, %s26
      %s29 = ssub.s32 %s16, %s28
      %s30 = ssub.s32 %s17, %s24
      %s31 = sor.u32 %s29, %s30
      %p32 = scmp.eq.s32.totalorder %s31, 0
      %s34 = sadd.s32 %s33, 1
      %s35 = scalar_select %p32, %s33, %s34
      %p38 = pneg %p32
      %p39 = scmp.eq.s32.totalorder %s9, 3
      %p40 = por %p38, %p39
      %p41 = scmp.ne.s32.totalorder %s33, %s36
      %p42 = scmp.eq.s32.totalorder %s9, 0
      %p43 = por %p41, %p42
      %p44 = scmp.ne.s32.totalorder %s33, %s36
      %p45 = scmp.eq.s32.totalorder %s14, 3
      %p46 = por %p44, %p45
      %p47 = scmp.ne.s32.totalorder %s36, %s37
      %p48 = scmp.eq.s32.totalorder %s14, 0
      %p49 = por %p47, %p48
      %p50 = scmp.ne.s32.totalorder %s36, %s37
      %p51 = scmp.eq.s32.totalorder %s15, 3
      %p52 = por %p50, %p51
      %p54 = scmp.ne.s32.totalorder %s37, %s53
      %p55 = scmp.eq.s32.totalorder %s15, 0
      %p56 = por %p54, %p55
      %s58 = sadd.s32 %s57, 1
      %p61 = scmp.eq.s32.totalorder %s9, 3
      %p62 = scmp.ne.s32.totalorder %s57, %s59
      %p63 = scmp.eq.s32.totalorder %s9, 0
      %p64 = por %p62, %p63
      %p65 = scmp.ne.s32.totalorder %s57, %s59
      %p66 = scmp.eq.s32.totalorder %s14, 3
      %p67 = por %p65, %p66
      %p68 = scmp.ne.s32.totalorder %s59, %s60
      %p69 = scmp.eq.s32.totalorder %s14, 0
      %p70 = por %p68, %p69
      %p71 = scmp.ne.s32.totalorder %s59, %s60
      %p72 = scmp.eq.s32.totalorder %s15, 3
      %p73 = por %p71, %p72
      %p75 = scmp.ne.s32.totalorder %s60, %s74
      %p76 = scmp.eq.s32.totalorder %s15, 0
      %p77 = por %p75, %p76
      %s79 = sadd.s32 %s78, 1
      %p82 = scmp.eq.s32.totalorder %s9, 3
      %p83 = scmp.ne.s32.totalorder %s78, %s80
      %p84 = scmp.eq.s32.totalorder %s9, 0
      %p85 = por %p83, %p84
      %p86 = scmp.ne.s32.totalorder %s78, %s80
      %p87 = scmp.eq.s32.totalorder %s14, 3
      %p88 = por %p86, %p87
      %p89 = scmp.ne.s32.totalorder %s80, %s81
      %p90 = scmp.eq.s32.totalorder %s14, 0
      %p91 = por %p89, %p90
      %p92 = scmp.ne.s32.totalorder %s80, %s81
      %p93 = scmp.eq.s32.totalorder %s15, 3
      %p94 = por %p92, %p93
      %p96 = scmp.ne.s32.totalorder %s81, %s95
      %p97 = scmp.eq.s32.totalorder %s15, 0
      %p98 = por %p96, %p97
      %s99 = ssub.s32 %s16, %s28
      %p100 = scmp.eq.s32.totalorder %s99, 0
      %s102 = sadd.s32 %s101, 1
      %s103 = scalar_select %p100, %s101, %s102
      %p106 = pneg %p100
      %p107 = scmp.eq.s32.totalorder %s9, 3
      %p108 = por %p106, %p107
      %p109 = scmp.ne.s32.totalorder %s101, %s104
      %p110 = scmp.eq.s32.totalorder %s9, 0
      %p111 = por %p109, %p110
      %p112 = scmp.ne.s32.totalorder %s101, %s104
      %p113 = scmp.eq.s32.totalorder %s14, 3
      %p114 = por %p112, %p113
      %p115 = scmp.ne.s32.totalorder %s104, %s105
      %p116 = scmp.eq.s32.totalorder %s14, 0
      %p117 = por %p115, %p116
      %p118 = scmp.ne.s32.totalorder %s104, %s105
      %p119 = scmp.eq.s32.totalorder %s15, 3
      %p120 = por %p118, %p119
      %p122 = scmp.ne.s32.totalorder %s105, %s121
      %p123 = scmp.eq.s32.totalorder %s15, 0
      %p124 = por %p122, %p123
      %p125 = scmp.le.s32.totalorder 1, %s9
      %p126 = scmp.lt.s32.totalorder %s9, 5
      %p127 = pnand %p125, %p126
      %p128 = pneg %p127
      // Predicated region
      $region9: #{edge_weight_attention.2} parent=5 // pred_check
        _
      $region10: #{edge_weight_attention.2} parent=5 // pred_check_branch
        %130 = sbr.rel (%p127) target = $region12
      $region11: #{edge_weight_attention.2} parent=5 // pred_region
        %s131 = ssub.s32 %s9, 1
        // Predicated region
        $region13: #{edge_weight_attention.2} parent=11 // pred_check
          %p132 = pneg %p70
        $region14: #{edge_weight_attention.2} parent=11 // pred_check_branch
          %134 = sbr.rel (%p132) target = $region16
        $region15: #{edge_weight_attention.2} parent=11 // pred_region
          _
        $region16: #{edge_weight_attention.2} parent=11 // pred_fallthru
          _
        // Predicated region
        $region17: #{edge_weight_attention.2} parent=11 // pred_check
          %p135 = pneg %p91
        $region18: #{edge_weight_attention.2} parent=11 // pred_check_branch
          %137 = sbr.rel (%p135) target = $region20
        $region19: #{edge_weight_attention.2} parent=11 // pred_region
          _
        $region20: #{edge_weight_attention.2} parent=11 // pred_fallthru
          _
      $region12: #{edge_weight_attention.2} parent=5 // pred_fallthru
        _
      %p138 = scmp.lt.s32.totalorder %s9, 4
      // Predicated region
      $region21: #{edge_weight_attention.2} parent=5 // pred_check
        %p139 = pneg %p138
      $region22: #{edge_weight_attention.2} parent=5 // pred_check_branch
        %141 = sbr.rel (%p139) target = $region24
      $region23: #{edge_weight_attention.2} parent=5 // pred_region
        // Predicated region
        $region25: #{edge_weight_attention.2} parent=23 // pred_check
          %p142 = pneg %p43
        $region26: #{edge_weight_attention.2} parent=23 // pred_check_branch
          %144 = sbr.rel (%p142) target = $region28
        $region27: #{edge_weight_attention.2} parent=23 // pred_region
          %s145 = sand.u32 %s33, 1
          %s146 = sand.u32 %s33, 1
          %s147 = smul.addr %s146, 32
          %s148 = scalar_lea.vmem [#allocation4], %s147
          %s149 = smul.addr %s16, 8
          %s150 = sadd.s32 %s17, %s149
          %s151 = smul.addr %s150, 8
          %s152 = scalar_lea.vmem %s0, %s151
          // Predicated region
          $region29: #{edge_weight_attention.2} parent=27 // pred_check
            _
          $region30: #{edge_weight_attention.2} parent=27 // pred_check_branch
            %154 = sbr.rel (0) target = $region32
          $region31: #{edge_weight_attention.2} parent=27 // pred_region
            // Predicated region
            $region33: #{edge_weight_attention.2} parent=31 // pred_check
              _
            $region34: #{edge_weight_attention.2} parent=31 // pred_check_branch
              %156 = sbr.rel (0) target = $region36
            $region35: #{edge_weight_attention.2} parent=31 // pred_region
              // Predicated region
              $region48: #{edge_weight_attention.2} parent=35 // pred_check
                _
              $region49: #{edge_weight_attention.2} parent=35 // pred_check_branch
                %178 = sbr.rel (0) target = $region51
              $region50: #{edge_weight_attention.2} parent=35 // pred_region
                loop: start=0, step=1, limit=1
                $region52: #{edge_weight_attention.2} parent=50 // loop_pre_header
                  _
                $region53: #{edge_weight_attention.2} parent=50 // loop_header
                  %s180 = sphi 0, %s184
                  %p181 = scmp.ge.s32.totalorder %s180, 1
                  %s185 = sphi %s152, %s152
                  %s186 = sphi %s148, %s148
                $region54: #{edge_weight_attention.2} parent=50 // loop_header_branch
                  %183 = sbr.rel (%p181) target = $region58
                $region55: #{edge_weight_attention.2} parent=50 // loop_body
                  %v187 = vld [vmem:[%s185] sm:$0xff]
                  %188 = vst [vmem:[%s186] sm:$0xff] %v187
                  %v189 = vld [vmem:[%s185 + $0x10] sm:$0xff]
                  %190 = vst [vmem:[%s186 + $0x8] sm:$0xff] %v189
                  %v191 = vld [vmem:[%s185 + $0x20] sm:$0xff]
                  %192 = vst [vmem:[%s186 + $0x10] sm:$0xff] %v191
                  %v193 = vld [vmem:[%s185 + $0x30] sm:$0xff]
                  %194 = vst [vmem:[%s186 + $0x18] sm:$0xff] %v193
                $region56: #{edge_weight_attention.2} parent=50 // loop_footer
                  %s184 = sadd.s32 1, %s180
                $region57: #{edge_weight_attention.2} parent=50 // loop_footer_branch
                  %179 = sbr.rel target = $region53
                $region58: #{edge_weight_attention.2} parent=50 // loop_exit
                  _
              $region51: #{edge_weight_attention.2} parent=35 // pred_fallthru
                _
              // Predicated region
              $region59: #{edge_weight_attention.2} parent=35 // pred_check
                _
              $region60: #{edge_weight_attention.2} parent=35 // pred_check_branch
                %196 = sbr.rel target = $region62
              $region61: #{edge_weight_attention.2} parent=35 // pred_region
                _
              $region62: #{edge_weight_attention.2} parent=35 // pred_fallthru
                _
            $region36: #{edge_weight_attention.2} parent=31 // pred_fallthru
              _
            // Predicated region
            $region37: #{edge_weight_attention.2} parent=31 // pred_check
              _
            $region38: #{edge_weight_attention.2} parent=31 // pred_check_branch
              %158 = sbr.rel target = $region40
            $region39: #{edge_weight_attention.2} parent=31 // pred_region
              %s160 = ssub.s32 256, 1
              loop: start=0, step=1, limit=1
              $region41: #{edge_weight_attention.2} parent=39 // loop_pre_header
                _
              $region42: #{edge_weight_attention.2} parent=39 // loop_header
                %s162 = sphi 0, %s166
                %p163 = scmp.ge.s32.totalorder %s162, 1
                %s167 = sphi %s152, %s152
                %s168 = sphi %s148, %s148
              $region43: #{edge_weight_attention.2} parent=39 // loop_header_branch
                %165 = sbr.rel (%p163) target = $region47
              $region44: #{edge_weight_attention.2} parent=39 // loop_body
                %v169 = vld [vmem:[%s167] sm:%s160]
                %170 = vst [vmem:[%s168] sm:%s160] %v169
                %v171 = vld [vmem:[%s167 + $0x10] sm:%s160]
                %172 = vst [vmem:[%s168 + $0x8] sm:%s160] %v171
                %v173 = vld [vmem:[%s167 + $0x20] sm:%s160]
                %174 = vst [vmem:[%s168 + $0x10] sm:%s160] %v173
                %v175 = vld [vmem:[%s167 + $0x30] sm:%s160]
                %176 = vst [vmem:[%s168 + $0x18] sm:%s160] %v175
              $region45: #{edge_weight_attention.2} parent=39 // loop_footer
                %s166 = sadd.s32 1, %s162
              $region46: #{edge_weight_attention.2} parent=39 // loop_footer_branch
                %161 = sbr.rel target = $region42
              $region47: #{edge_weight_attention.2} parent=39 // loop_exit
                _
            $region40: #{edge_weight_attention.2} parent=31 // pred_fallthru
              _
          $region32: #{edge_weight_attention.2} parent=27 // pred_fallthru
            _
          %197 = vnop
        $region28: #{edge_weight_attention.2} parent=23 // pred_fallthru
          _
      $region24: #{edge_weight_attention.2} parent=5 // pred_fallthru
        _
      %p198 = scmp.le.s32.totalorder 1, %s9
      %p199 = scmp.lt.s32.totalorder %s9, 5
      %p200 = pnand %p198, %p199
      %p201 = pneg %p200
      // Predicated region
      $region63: #{edge_weight_attention.2} parent=5 // pred_check
        _
      $region64: #{edge_weight_attention.2} parent=5 // pred_check_branch
        %203 = sbr.rel (%p200) target = $region66
      $region65: #{edge_weight_attention.2} parent=5 // pred_region
        %s204 = ssub.s32 %s9, 1
        %s205 = sand.u32 %s36, 1
        %s206 = sand.u32 %s36, 1
        %s207 = smul.addr %s206, 32
        %s208 = scalar_lea.vmem [#allocation4], %s207
        // Predicated region
        $region67: #{edge_weight_attention.2} parent=65 // pred_check
          %p209 = pneg %p49
        $region68: #{edge_weight_attention.2} parent=65 // pred_check_branch
          %211 = sbr.rel (%p209) target = $region70
        $region69: #{edge_weight_attention.2} parent=65 // pred_region
          _
        $region70: #{edge_weight_attention.2} parent=65 // pred_fallthru
          _
        %s212 = sand.u32 %s36, 1
        %s213 = sand.u32 %s36, 1
        %s214 = smul.addr %s213, 32
        %s215 = scalar_lea.vmem [#allocation4], %s214
        %p216 = pneg %p49
        %p217 = pneg %p46
        %p218 = pneg %p70
        %p219 = pneg %p67
        %p220 = pneg %p91
        %p221 = pneg %p88
        %p222 = pneg %p117
        %p223 = pneg %p114
        %p224 = scmp.lt.s32.totalorder %s18, 1
        %s225 = scalar_select %p224, %s18, 1
        %s226 = smul.addr %s225, 4
        %s227 = smul.addr %s226, 8
        %s228 = scalar_lea.vmem %s3, %s227
        %p229 = scmp.lt.s32.totalorder %s18, 1
        %s230 = scalar_select %p229, %s18, 1
        %s231 = smul.addr %s230, 4
        %s232 = smul.addr %s231, 8
        %s233 = scalar_lea.vmem %s3, %s232
        %p234 = scmp.eq.s32.totalorder %s19, 0
        // Predicated region
        $region71: #{edge_weight_attention.2} parent=65 // pred_check
          %p235 = pneg %p234
        $region72: #{edge_weight_attention.2} parent=65 // pred_check_branch
          %237 = sbr.rel (%p235) target = $region74
        $region73: #{edge_weight_attention.2} parent=65 // pred_region
          %238 = vst [vmem:[#allocation2] sm:$0xff] 0.0
          %239 = vst [vmem:[#allocation2 + $0x8] sm:$0xff] 0.0
          %240 = vst [vmem:[#allocation2 + $0x10] sm:$0xff] 0.0
          %241 = vst [vmem:[#allocation2 + $0x18] sm:$0xff] 0.0
          %242 = vst [vmem:[#allocation3] sm:$0xff] -inf
          %243 = vst [vmem:[#allocation3 + $0x8] sm:$0xff] -inf
          %244 = vst [vmem:[#allocation3 + $0x10] sm:$0xff] -inf
          %245 = vst [vmem:[#allocation3 + $0x18] sm:$0xff] -inf
        $region74: #{edge_weight_attention.2} parent=65 // pred_fallthru
          _
        %v246 = vld [vmem:[%s208] sm:$0xff]
        %v247 = vld [vmem:[%s208 + $0x8] sm:$0xff]
        %v248 = vld [vmem:[%s208 + $0x10] sm:$0xff]
        %v249 = vld [vmem:[%s208 + $0x18] sm:$0xff]
        %v250 = vld [vmem:[#allocation2] sm:$0xff]
        %v251 = vld [vmem:[#allocation2 + $0x8] sm:$0xff]
        %v252 = vld [vmem:[#allocation2 + $0x10] sm:$0xff]
        %v253 = vld [vmem:[#allocation2 + $0x18] sm:$0xff]
        %v254 = vadd.f32 %v250, %v246
        %v255 = vadd.f32 %v251, %v247
        %v256 = vadd.f32 %v252, %v248
        %v257 = vadd.f32 %v253, %v249
        %258 = vst [vmem:[#allocation2] sm:$0xff] %v254
        %259 = vst [vmem:[#allocation2 + $0x8] sm:$0xff] %v255
        %260 = vst [vmem:[#allocation2 + $0x10] sm:$0xff] %v256
        %261 = vst [vmem:[#allocation2 + $0x18] sm:$0xff] %v257
        %v262 = vld [vmem:[#allocation3] sm:$0xff]
        %v263 = vld [vmem:[#allocation3 + $0x8] sm:$0xff]
        %v264 = vld [vmem:[#allocation3 + $0x10] sm:$0xff]
        %v265 = vld [vmem:[#allocation3 + $0x18] sm:$0xff]
        %v266 = vmax.f32 %v262, %v246
        %v267 = vmax.f32 %v263, %v247
        %v268 = vmax.f32 %v264, %v248
        %v269 = vmax.f32 %v265, %v249
        %270 = vst [vmem:[#allocation3] sm:$0xff] %v266
        %271 = vst [vmem:[#allocation3 + $0x8] sm:$0xff] %v267
        %272 = vst [vmem:[#allocation3 + $0x10] sm:$0xff] %v268
        %273 = vst [vmem:[#allocation3 + $0x18] sm:$0xff] %v269
        %p274 = scmp.eq.s32.totalorder %s19, 1
        // Predicated region
        $region75: #{edge_weight_attention.2} parent=65 // pred_check
          %p275 = pneg %p274
        $region76: #{edge_weight_attention.2} parent=65 // pred_check_branch
          %277 = sbr.rel (%p275) target = $region78
        $region77: #{edge_weight_attention.2} parent=65 // pred_region
          %v278 = vld [vmem:[#allocation2] sm:$0xff]
          %v279 = vld [vmem:[#allocation2 + $0x8] sm:$0xff]
          %v280 = vld [vmem:[#allocation2 + $0x10] sm:$0xff]
          %v281 = vld [vmem:[#allocation2 + $0x18] sm:$0xff]
          %282 = vadd.xlane.f32.xlu0 %v278
          %v283 = vpop.xlane.xlu0 %282
          %284 = vadd.xlane.f32.xlu0 %v279
          %v285 = vpop.xlane.xlu0 %284
          %286 = vadd.xlane.f32.xlu0 %v280
          %v287 = vpop.xlane.xlu0 %286
          %288 = vadd.xlane.f32.xlu0 %v281
          %v289 = vpop.xlane.xlu0 %288
          %v290 = vmul.f32 %v283, 0.00390625
          %v291 = vmul.f32 %v285, 0.00390625
          %v292 = vmul.f32 %v287, 0.00390625
          %v293 = vmul.f32 %v289, 0.00390625
          %v294 = vld [vmem:[#allocation3] sm:$0xff]
          %v295 = vld [vmem:[#allocation3 + $0x8] sm:$0xff]
          %v296 = vld [vmem:[#allocation3 + $0x10] sm:$0xff]
          %v297 = vld [vmem:[#allocation3 + $0x18] sm:$0xff]
          %298 = vmax.xlane.f32.xlu0 %v294
          %v299 = vpop.xlane.xlu0 %298
          %300 = vmax.xlane.f32.xlu0 %v295
          %v301 = vpop.xlane.xlu0 %300
          %302 = vmax.xlane.f32.xlu0 %v296
          %v303 = vpop.xlane.xlu0 %302
          %304 = vmax.xlane.f32.xlu0 %v297
          %v305 = vpop.xlane.xlu0 %304
          %v306 = vld [vmem:[%s1] sm:$0xff]
          %v307 = vld [vmem:[%s1 + $0x8] sm:$0xff]
          %v308 = vld [vmem:[%s1 + $0x10] sm:$0xff]
          %v309 = vld [vmem:[%s1 + $0x18] sm:$0xff]
          %v310 = vld [vmem:[%s2] sm:$0xff]
          %v311 = vld [vmem:[%s2 + $0x8] sm:$0xff]
          %v312 = vld [vmem:[%s2 + $0x10] sm:$0xff]
          %v313 = vld [vmem:[%s2 + $0x18] sm:$0xff]
          %vm314 = vcmask 261120
          %v316 = vsel %vm314, %v306, 0
          %v319 = vsel %vm314, %v307, 0
          %v322 = vsel %vm314, %v308, 0
          %v325 = vsel %vm314, %v309, 0
          %327 = vmatpush.msra.mxu0 0.0
          %328 = vmatpush.msra.mxu0 0.0
          %329 = vmatpush.msra.mxu0 0.0
          %330 = vmatpush.msra.mxu0 0.0
          %331 = vmatpush.msra.mxu0 0.0
          %332 = vmatpush.msra.mxu0 0.0
          %333 = vmatpush.msra.mxu0 0.0
          %334 = vmatpush.msra.mxu0 0.0
          %335 = vmatpush.msra.mxu0 0.0
          %336 = vmatpush.msra.mxu0 0.0
          %337 = vmatpush.msra.mxu0 0.0
          %338 = vmatpush.msra.mxu0 0.0
          %339 = vmatpush.msra.mxu0 %v293
          %340 = vmatpush.msra.mxu0 %v292
          %341 = vmatpush.msra.mxu0 %v291
          %342 = vmatpush.msra.mxu0 %v290
          %343 = vmatmul.f32.gmra.mxu0 %v316
          %v344 = vpop.f32.mrf.mxu0
          %v345 = vadd.f32 0.0, %v344
          %346 = vmatmul.f32.gmra.mxu0 %v319
          %v347 = vpop.f32.mrf.mxu0
          %v348 = vadd.f32 0.0, %v347
          %349 = vmatmul.f32.gmra.mxu0 %v322
          %v350 = vpop.f32.mrf.mxu0
          %v351 = vadd.f32 0.0, %v350
          %352 = vmatmul.f32.gmra.mxu0 %v325
          %v353 = vpop.f32.mrf.mxu0
          %v354 = vadd.f32 0.0, %v353
          %355 = vdwg.mxu0
          %v356 = vmax.f32 %v345, 0.0
          %v357 = vmax.f32 %v348, 0.0
          %v358 = vmax.f32 %v351, 0.0
          %v359 = vmax.f32 %v354, 0.0
          %360 = vmatpush.msra.mxu0 0.0
          %361 = vmatpush.msra.mxu0 0.0
          %362 = vmatpush.msra.mxu0 0.0
          %363 = vmatpush.msra.mxu0 0.0
          %364 = vmatpush.msra.mxu0 0.0
          %365 = vmatpush.msra.mxu0 0.0
          %366 = vmatpush.msra.mxu0 0.0
          %367 = vmatpush.msra.mxu0 0.0
          %368 = vmatpush.msra.mxu0 0.0
          %369 = vmatpush.msra.mxu0 0.0
          %370 = vmatpush.msra.mxu0 0.0
          %371 = vmatpush.msra.mxu0 0.0
          %372 = vmatpush.msra.mxu0 %v305
          %373 = vmatpush.msra.mxu0 %v303
          %374 = vmatpush.msra.mxu0 %v301
          %375 = vmatpush.msra.mxu0 %v299
          %376 = vmatmul.f32.gmra.mxu0 %v316
          %v377 = vpop.f32.mrf.mxu0
          %v378 = vadd.f32 0.0, %v377
          %379 = vmatmul.f32.gmra.mxu0 %v319
          %v380 = vpop.f32.mrf.mxu0
          %v381 = vadd.f32 0.0, %v380
          %382 = vmatmul.f32.gmra.mxu0 %v322
          %v383 = vpop.f32.mrf.mxu0
          %v384 = vadd.f32 0.0, %v383
          %385 = vmatmul.f32.gmra.mxu0 %v325
          %v386 = vpop.f32.mrf.mxu0
          %v387 = vadd.f32 0.0, %v386
          %388 = vdwg.mxu0
          %v389 = vmax.f32 %v378, 0.0
          %v390 = vmax.f32 %v381, 0.0
          %v391 = vmax.f32 %v384, 0.0
          %v392 = vmax.f32 %v387, 0.0
          %v393 = vadd.f32 %v356, %v389
          %v394 = vadd.f32 %v357, %v390
          %v395 = vadd.f32 %v358, %v391
          %v396 = vadd.f32 %v359, %v392
          %v398 = vsel %vm314, %v310, 0
          %v401 = vsel %vm314, %v311, 0
          %v404 = vsel %vm314, %v312, 0
          %v407 = vsel %vm314, %v313, 0
          %409 = vmatpush.msra.mxu0 0.0
          %410 = vmatpush.msra.mxu0 0.0
          %411 = vmatpush.msra.mxu0 0.0
          %412 = vmatpush.msra.mxu0 0.0
          %413 = vmatpush.msra.mxu0 0.0
          %414 = vmatpush.msra.mxu0 0.0
          %415 = vmatpush.msra.mxu0 0.0
          %416 = vmatpush.msra.mxu0 0.0
          %417 = vmatpush.msra.mxu0 0.0
          %418 = vmatpush.msra.mxu0 0.0
          %419 = vmatpush.msra.mxu0 0.0
          %420 = vmatpush.msra.mxu0 0.0
          %421 = vmatpush.msra.mxu0 %v396
          %422 = vmatpush.msra.mxu0 %v395
          %423 = vmatpush.msra.mxu0 %v394
          %424 = vmatpush.msra.mxu0 %v393
          %425 = vmatmul.f32.gmra.mxu0 %v398
          %v426 = vpop.f32.mrf.mxu0
          %v427 = vadd.f32 0.0, %v426
          %428 = vmatmul.f32.gmra.mxu0 %v401
          %v429 = vpop.f32.mrf.mxu0
          %v430 = vadd.f32 0.0, %v429
          %431 = vmatmul.f32.gmra.mxu0 %v404
          %v432 = vpop.f32.mrf.mxu0
          %v433 = vadd.f32 0.0, %v432
          %434 = vmatmul.f32.gmra.mxu0 %v407
          %v435 = vpop.f32.mrf.mxu0
          %v436 = vadd.f32 0.0, %v435
          %437 = vdwg.mxu0
          %v438 = vxor.u32 %v427, 2147483648
          %v439 = vxor.u32 %v430, 2147483648
          %v440 = vxor.u32 %v433, 2147483648
          %v441 = vxor.u32 %v436, 2147483648
          %v442 = vmul.f32 %v438, 1.442695
          %v443 = vpow.pop %v442
          %v444 = vmul.f32 %v439, 1.442695
          %v445 = vpow.pop %v444
          %v446 = vmul.f32 %v440, 1.442695
          %v447 = vpow.pop %v446
          %v448 = vmul.f32 %v441, 1.442695
          %v449 = vpow.pop %v448
          %v450 = vadd.f32 %v443, 1.0
          %v451 = vadd.f32 %v445, 1.0
          %v452 = vadd.f32 %v447, 1.0
          %v453 = vadd.f32 %v449, 1.0
          %v454 = vrcp.pop %v450
          %v455 = vmul.f32 %v450, %v454
          %v456 = vsub.f32 1.0, %v455
          %v457 = vmul.f32 %v454, %v456
          %v458 = vadd.f32 %v454, %v457
          %vm459 = vweird.f32 %v450
          %vm460 = vweird.f32 %v454
          %vm461 = vmor %vm459, %vm460
          %v462 = vsel %vm461, %v454, %v458
          %v463 = vand.u32 2147483647, %v450
          %vm464 = vcmp.eq.f32.partialorder %v463, 8.507059e+37
          %v465 = vand.u32 %v450, 2147483648
          %v466 = vor.u32 1.1754944e-38, %v465
          %v467 = vsel %vm464, %v466, %v462
          %v468 = vmul.f32 1.0, %v467
          %v469 = vrcp.pop %v451
          %v470 = vmul.f32 %v451, %v469
          %v471 = vsub.f32 1.0, %v470
          %v472 = vmul.f32 %v469, %v471
          %v473 = vadd.f32 %v469, %v472
          %vm474 = vweird.f32 %v451
          %vm475 = vweird.f32 %v469
          %vm476 = vmor %vm474, %vm475
          %v477 = vsel %vm476, %v469, %v473
          %v478 = vand.u32 2147483647, %v451
          %vm479 = vcmp.eq.f32.partialorder %v478, 8.507059e+37
          %v480 = vand.u32 %v451, 2147483648
          %v481 = vor.u32 1.1754944e-38, %v480
          %v482 = vsel %vm479, %v481, %v477
          %v483 = vmul.f32 1.0, %v482
          %v484 = vrcp.pop %v452
          %v485 = vmul.f32 %v452, %v484
          %v486 = vsub.f32 1.0, %v485
          %v487 = vmul.f32 %v484, %v486
          %v488 = vadd.f32 %v484, %v487
          %vm489 = vweird.f32 %v452
          %vm490 = vweird.f32 %v484
          %vm491 = vmor %vm489, %vm490
          %v492 = vsel %vm491, %v484, %v488
          %v493 = vand.u32 2147483647, %v452
          %vm494 = vcmp.eq.f32.partialorder %v493, 8.507059e+37
          %v495 = vand.u32 %v452, 2147483648
          %v496 = vor.u32 1.1754944e-38, %v495
          %v497 = vsel %vm494, %v496, %v492
          %v498 = vmul.f32 1.0, %v497
          %v499 = vrcp.pop %v453
          %v500 = vmul.f32 %v453, %v499
          %v501 = vsub.f32 1.0, %v500
          %v502 = vmul.f32 %v499, %v501
          %v503 = vadd.f32 %v499, %v502
          %vm504 = vweird.f32 %v453
          %vm505 = vweird.f32 %v499
          %vm506 = vmor %vm504, %vm505
          %v507 = vsel %vm506, %v499, %v503
          %v508 = vand.u32 2147483647, %v453
          %vm509 = vcmp.eq.f32.partialorder %v508, 8.507059e+37
          %v510 = vand.u32 %v453, 2147483648
          %v511 = vor.u32 1.1754944e-38, %v510
          %v512 = vsel %vm509, %v511, %v507
          %v513 = vmul.f32 1.0, %v512
          %vm514 = vcmask 7168
          %515 = vst.msk [vmem:[%s233] sm:$0xff] %vm514, %v468
          %516 = vst.msk [vmem:[%s233 + $0x8] sm:$0xff] %vm514, %v483
          %517 = vst.msk [vmem:[%s233 + $0x10] sm:$0xff] %vm514, %v498
          %518 = vst.msk [vmem:[%s233 + $0x18] sm:$0xff] %vm514, %v513
        $region78: #{edge_weight_attention.2} parent=65 // pred_fallthru
          _
        %p519 = scmp.lt.s32.totalorder %s18, 1
        %s520 = scalar_select %p519, %s18, 1
        %s521 = smul.addr %s520, 4
        %s522 = smul.addr %s521, 8
        %s523 = scalar_lea.vmem %s3, %s522
        // Predicated region
        $region79: #{edge_weight_attention.2} parent=65 // pred_check
          %p524 = pneg %p114
        $region80: #{edge_weight_attention.2} parent=65 // pred_check_branch
          %526 = sbr.rel (%p524) target = $region82
        $region81: #{edge_weight_attention.2} parent=65 // pred_region
          _
        $region82: #{edge_weight_attention.2} parent=65 // pred_fallthru
          _
      $region66: #{edge_weight_attention.2} parent=5 // pred_fallthru
        _
      %p527 = scmp.le.s32.totalorder 2, %s9
      // Predicated region
      $region83: #{edge_weight_attention.2} parent=5 // pred_check
        %p528 = pneg %p527
      $region84: #{edge_weight_attention.2} parent=5 // pred_check_branch
        %530 = sbr.rel (%p528) target = $region86
      $region85: #{edge_weight_attention.2} parent=5 // pred_region
        %s531 = ssub.s32 %s9, 2
        // Predicated region
        $region87: #{edge_weight_attention.2} parent=85 // pred_check
          %p532 = pneg %p120
        $region88: #{edge_weight_attention.2} parent=85 // pred_check_branch
          %534 = sbr.rel (%p532) target = $region90
        $region89: #{edge_weight_attention.2} parent=85 // pred_region
          %p535 = scmp.lt.s32.totalorder %s20, 1
          %s536 = scalar_select %p535, %s20, 1
          %s537 = smul.addr %s536, 4
          %s538 = smul.addr %s537, 8
          %s539 = scalar_lea.vmem %s3, %s538
        $region90: #{edge_weight_attention.2} parent=85 // pred_fallthru
          _
      $region86: #{edge_weight_attention.2} parent=5 // pred_fallthru
        _
    $region6: #{edge_weight_attention.2} parent=1 // loop_footer
      %s13 = sadd.s32 1, %s9
    $region7: #{edge_weight_attention.2} parent=1 // loop_footer_branch
      %8 = sbr.rel target = $region3
    $region8: #{edge_weight_attention.2} parent=1 // loop_exit
      _

</llo_original>
